<compile_context>
chip_gen: v5e
topology: v5e:2x2
jax: 0.10.0
libtpu: 0.0.40
codegen_flags: <defaults>
</compile_context>

<pallas_src>
import math

import jax
import jax.numpy as jnp
from jax.experimental import pallas as pl
from jax.experimental.pallas import tpu as pltpu


# ----------------------------------------------------------------------------
# Kernels
# ----------------------------------------------------------------------------
def _kl_mvn_diag_std_kernel(mean_ref, logvar_ref, out_ref):
    # upcast so the D-reduction accumulates in f32 even for bf16 inputs
    mean = mean_ref[...].astype(jnp.float32)
    logvar = logvar_ref[...].astype(jnp.float32)
    # 0.5 * sum(exp(logvar) + mean^2 - 1 - logvar, axis=1)
    term = jnp.exp(logvar) + mean * mean - 1.0 - logvar
    out_ref[...] = (0.5 * jnp.sum(term, axis=1, keepdims=True)).astype(out_ref.dtype)


def _kl_mvn_diag_diag_kernel(m1_ref, lv1_ref, m2_ref, lv2_ref, out_ref):
    m1 = m1_ref[...].astype(jnp.float32)
    lv1 = lv1_ref[...].astype(jnp.float32)
    m2 = m2_ref[...].astype(jnp.float32)
    lv2 = lv2_ref[...].astype(jnp.float32)
    # 0.5 * sum(lv2 - lv1 + (exp(lv1) + (m2 - m1)^2) / exp(lv2) - 1, axis=1)
    diff = m2 - m1
    term = lv2 - lv1 + (jnp.exp(lv1) + diff * diff) * jnp.exp(-lv2) - 1.0
    out_ref[...] = (0.5 * jnp.sum(term, axis=1, keepdims=True)).astype(out_ref.dtype)


def _kl_bernoulli_kernel(p_logits_ref, q_logits_ref, out_ref):
    x = p_logits_ref[...].astype(jnp.float32)   # p logits
    y = q_logits_ref[...].astype(jnp.float32)   # q logits

    # stable softplus(t) = log1p(exp(-|t|)) + max(t, 0)
    e_x = jnp.exp(-jnp.abs(x))
    e_y = jnp.exp(-jnp.abs(y))
    sp_x = jnp.log1p(e_x) + jnp.maximum(x, 0.0)
    sp_y = jnp.log1p(e_y) + jnp.maximum(y, 0.0)

    # stable sigmoid(x) reusing e_x; exact (non-approx) reciprocal because the
    # value feeds the p==0 / p==1 equality guards below.
    r_x = 1.0 / (1.0 + e_x)
    p = jnp.where(x >= 0.0, r_x, e_x * r_x)

    # KL(Ber(p) || Ber(q)) in logit form.
    kl = p * (x - y) + sp_y - sp_x

    # Reference guards: t1=inf where q==0 (unless p==0 -> 0), t2=inf where q==1
    # (unless p==1 -> 0).  In logit form the p==0 / p==1 cases already evaluate
    # to the correct finite values; only q-saturation -> inf needs an override.
    # q's saturation is detected on the logit-side quantities (no extra EUP):
    #   q == 1  <=>  y >= 0 and (1 + exp(-y)) rounds to 1
    #   q == 0  <=>  y <  0 and exp(y) underflows to 0
    inf = jnp.float32(jnp.inf)
    q_is_one = jnp.logical_and(y >= 0.0, (1.0 + e_y) == 1.0)
    q_is_zero = jnp.logical_and(y < 0.0, e_y == 0.0)
    kl = jnp.where(jnp.logical_and(q_is_zero, p != 0.0), inf, kl)
    kl = jnp.where(jnp.logical_and(q_is_one, p != 1.0), inf, kl)

    out_ref[...] = kl.astype(out_ref.dtype)


# ----------------------------------------------------------------------------
# Tile sizing helpers
# ----------------------------------------------------------------------------
def _round_up(x, m):
    return ((x + m - 1) // m) * m


def _sublane(itemsize):
    # sublane multiple by dtype width: f32 -> 8, bf16 -> 16, int8/fp8 -> 32
    return max(8, 32 // max(1, itemsize))


def _vmem_budget_and_limit():
    try:
        cap = int(pltpu.get_tpu_info().vmem_capacity_bytes)
    except Exception:
        cap = 64 * 1024 * 1024
    # Defensive: cap the scoped limit at 48 MiB.  Safe and generous on
    # v5e/v6e (128 MiB VMEM) and leaves 25% headroom on v7x (64 MiB per TC)
    # even if the capacity query reports per-chip rather than per-core.
    limit = min((cap * 3) // 4, 48 * 1024 * 1024)
    # ~0.4x of the limit for the double-buffered streaming working set; the
    # rest is headroom for Mosaic internal scratch and f32 upcast temporaries.
    budget = (limit * 2) // 5
    return budget, limit


def _pick_tb(B, bytes_per_row, itemsize, budget):
    """Batch tile: largest sublane-aligned row count whose double-buffered
    streaming working set fits the VMEM budget, split further (>= 4 grid steps)
    when the batch permits so the pipeline and both v7x cores stay busy."""
    sub = _sublane(itemsize)
    tb = budget // max(1, 2 * bytes_per_row)          # x2 for double buffering
    tb = max(sub, (tb // sub) * sub)
    tb = min(tb, _round_up(B, sub))
    min_grid = 4
    if pl.cdiv(B, tb) < min_grid:
        tb_split = max(sub, _round_up(pl.cdiv(B, min_grid), sub))
        if tb_split * bytes_per_row >= (1 << 20):     # keep >= ~1 MiB per step
            tb = tb_split
    return tb


# ----------------------------------------------------------------------------
# Wrappers (grid over batch tiles; full latent dim resident per tile;
# ragged batches handled by Pallas boundary-block masking — no jnp.pad)
# ----------------------------------------------------------------------------
def kl_mvn_diag_std(mean, logvar, *, tb=None):
    B, D = mean.shape
    itemsize = jnp.dtype(mean.dtype).itemsize
    bytes_per_row = 2 * D * itemsize + 4              # 2 inputs + f32 column out
    budget, vmem_limit = _vmem_budget_and_limit()
    if tb is None:
        tb = _pick_tb(B, bytes_per_row, itemsize, budget)
    grid = pl.cdiv(B, tb)

    out = pl.pallas_call(
        _kl_mvn_diag_std_kernel,
        out_shape=jax.ShapeDtypeStruct((B, 1), jnp.float32),
        grid_spec=pl.GridSpec(
            grid=(grid,),
            in_specs=[pl.BlockSpec((tb, D), lambda i: (i, 0)),
                      pl.BlockSpec((tb, D), lambda i: (i, 0))],
            out_specs=pl.BlockSpec((tb, 1), lambda i: (i, 0)),
        ),
        compiler_params=pltpu.CompilerParams(
            dimension_semantics=("parallel",),
            vmem_limit_bytes=vmem_limit),
    )(mean, logvar)
    return out[:, 0]


def kl_mvn_diag_diag(mean1, logvar1, mean2, logvar2, *, tb=None):
    B, D = mean1.shape
    itemsize = jnp.dtype(mean1.dtype).itemsize
    bytes_per_row = 4 * D * itemsize + 4              # 4 inputs + f32 column out
    budget, vmem_limit = _vmem_budget_and_limit()
    if tb is None:
        tb = _pick_tb(B, bytes_per_row, itemsize, budget)
    grid = pl.cdiv(B, tb)

    out = pl.pallas_call(
        _kl_mvn_diag_diag_kernel,
        out_shape=jax.ShapeDtypeStruct((B, 1), jnp.float32),
        grid_spec=pl.GridSpec(
            grid=(grid,),
            in_specs=[pl.BlockSpec((tb, D), lambda i: (i, 0))] * 4,
            out_specs=pl.BlockSpec((tb, 1), lambda i: (i, 0)),
        ),
        compiler_params=pltpu.CompilerParams(
            dimension_semantics=("parallel",),
            vmem_limit_bytes=vmem_limit),
    )(mean1, logvar1, mean2, logvar2)
    return out[:, 0]


def kl_bernoulli_bernoulli(p_logits, q_logits, *, tb=None):
    B, D = p_logits.shape
    p_in, q_in = p_logits, q_logits

    # Lane-dense packing: fold g rows into the lane dim (pure metadata reshape,
    # no copy) when D is not a multiple of 128, so every vreg is fully used.
    # EUP throughput is the binding unit for this kernel; D=32 would otherwise
    # waste 4x of it.  Falls back to (B, D) when B % g != 0.
    g = 128 // math.gcd(D, 128)
    if D % 128 != 0 and g > 1 and B % g == 0:
        p_in = p_in.reshape(B // g, D * g)
        q_in = q_in.reshape(B // g, D * g)

    R, W = p_in.shape
    itemsize = jnp.dtype(p_in.dtype).itemsize
    bytes_per_row = 2 * W * itemsize + W * 4          # 2 inputs + f32 elementwise out
    budget, vmem_limit = _vmem_budget_and_limit()
    if tb is None:
        tb = _pick_tb(R, bytes_per_row, itemsize, budget)
    grid = pl.cdiv(R, tb)

    out = pl.pallas_call(
        _kl_bernoulli_kernel,
        out_shape=jax.ShapeDtypeStruct((R, W), jnp.float32),
        grid_spec=pl.GridSpec(
            grid=(grid,),
            in_specs=[pl.BlockSpec((tb, W), lambda i: (i, 0)),
                      pl.BlockSpec((tb, W), lambda i: (i, 0))],
            out_specs=pl.BlockSpec((tb, W), lambda i: (i, 0)),
        ),
        compiler_params=pltpu.CompilerParams(
            dimension_semantics=("parallel",),
            vmem_limit_bytes=vmem_limit),
    )(p_in, q_in)
    return out.reshape(B, D)


class KLDivergence:
    """Mirrors the PyTorch module's dispatch; __call__ == forward."""

    def __init__(self, p: str, q: str, prior=None):
        self.p, self.q = p, q
        if p == "mvn_diag" and q == "mvn_std":
            self._loss = kl_mvn_diag_std
        elif p == "mvn_diag" and q == "mvn_diag":
            self._loss = kl_mvn_diag_diag
        elif p == "bernoulli" and q == "bernoulli":
            self._loss = kl_bernoulli_bernoulli
        else:
            raise NotImplementedError
        self.prior = prior

    def __call__(self, *args, **kwargs):
        return self._loss(*args, **kwargs)


# ----------------------------------------------------------------------------
# Pure-JAX references (direct ports of the PyTorch formulas) for sanity checks
# ----------------------------------------------------------------------------
def _ref_mvn_diag_std(mean, logvar):
    return 0.5 * jnp.sum(jnp.exp(logvar) + mean ** 2 - 1.0 - logvar, axis=1)


def _ref_mvn_diag_diag(m1, lv1, m2, lv2):
    return 0.5 * jnp.sum(
        lv2 - lv1 + (jnp.exp(lv1) + (m2 - m1) ** 2) / jnp.exp(lv2) - 1.0, axis=1)


def _ref_bernoulli(pl_, ql_):
    p, q = jax.nn.sigmoid(pl_), jax.nn.sigmoid(ql_)
    t1 = p * jnp.log(p / q)
    t1 = jnp.where(q == 0.0, jnp.inf, t1)
    t1 = jnp.where(p == 0.0, 0.0, t1)
    t2 = (1 - p) * jnp.log((1 - p) / (1 - q))
    t2 = jnp.where(q == 1.0, jnp.inf, t2)
    t2 = jnp.where(p == 1.0, 0.0, t2)
    return t1 + t2


if __name__ == "__main__":
    B, D = 8, 32
    key = jax.random.PRNGKey(0)
    k1, k2, k3, k4 = jax.random.split(key, 4)

    mean1 = jax.random.normal(k1, (B, D), dtype=jnp.float32)
    logvar1 = 0.1 * jax.random.normal(k2, (B, D), dtype=jnp.float32)
    mean2 = jax.random.normal(k3, (B, D), dtype=jnp.float32)
    logvar2 = 0.1 * jax.random.normal(k4, (B, D), dtype=jnp.float32)

    # p='mvn_diag', q='mvn_std'
    kl_std_mod = KLDivergence("mvn_diag", "mvn_std")
    out_std = jax.block_until_ready(kl_std_mod(mean1, logvar1))
    assert out_std.shape == (B,)
    assert jnp.allclose(out_std, _ref_mvn_diag_std(mean1, logvar1), rtol=1e-5, atol=1e-5)

    # p='mvn_diag', q='mvn_diag'
    kl_diag_mod = KLDivergence("mvn_diag", "mvn_diag")
    out_diag = jax.block_until_ready(kl_diag_mod(mean1, logvar1, mean2, logvar2))
    assert out_diag.shape == (B,)
    assert jnp.allclose(out_diag, _ref_mvn_diag_diag(mean1, logvar1, mean2, logvar2),
                        rtol=1e-5, atol=1e-5)

    # p='bernoulli', q='bernoulli'  (D=32 exercises the lane-dense reshape path)
    kl_bern_mod = KLDivergence("bernoulli", "bernoulli")
    p_logits = 2.0 * jax.random.normal(k1, (B, D), dtype=jnp.float32)
    q_logits = 2.0 * jax.random.normal(k2, (B, D), dtype=jnp.float32)
    out_bern = jax.block_until_ready(kl_bern_mod(p_logits, q_logits))
    assert out_bern.shape == (B, D)
    assert jnp.allclose(out_bern, _ref_bernoulli(p_logits, q_logits), rtol=2e-4, atol=1e-4)

    # ragged batch (exercises boundary-block masking; no padding pass)
    Br = 10
    mean_r = jax.random.normal(k3, (Br, D), dtype=jnp.float32)
    logvar_r = 0.1 * jax.random.normal(k4, (Br, D), dtype=jnp.float32)
    out_r = jax.block_until_ready(kl_std_mod(mean_r, logvar_r))
    assert out_r.shape == (Br,)
    assert jnp.allclose(out_r, _ref_mvn_diag_std(mean_r, logvar_r), rtol=1e-5, atol=1e-5)

    # ragged Bernoulli (B % g != 0 -> non-reshaped fallback + partial block)
    p_r = 2.0 * jax.random.normal(k3, (Br, D), dtype=jnp.float32)
    q_r = 2.0 * jax.random.normal(k4, (Br, D), dtype=jnp.float32)
    out_br = jax.block_until_ready(kl_bern_mod(p_r, q_r))
    assert out_br.shape == (Br, D)
    assert jnp.allclose(out_br, _ref_bernoulli(p_r, q_r), rtol=2e-4, atol=1e-4)

    print("KERNEL_OK")
</pallas_src>

<mosaic_0001>
module attributes {stable_mosaic.version = 11 : i64} {
  func.func @_kl_mvn_diag_std_kernel(%arg0: i32, %arg1: memref<8x32xf32, #tpu.memory_space<vmem>>, %arg2: memref<8x32xf32, #tpu.memory_space<vmem>>, %arg3: memref<8x1xf32, #tpu.memory_space<vmem>>) attributes {dimension_semantics = [#tpu.dimension_semantics<parallel>], iteration_bounds = array<i64: 1>, scalar_prefetch = 0 : i64, scratch_operands = 0 : i64, tpu.core_type = #tpu.core_type<tc>, window_params = [{transform_indices = @transform_0, window_bounds = array<i64: 8, 32>}, {transform_indices = @transform_1, window_bounds = array<i64: 8, 32>}, {transform_indices = @transform_2, window_bounds = array<i64: 8, 1>}]} {
    %c0 = arith.constant 0 : index
    %c0_0 = arith.constant 0 : index
    %0 = vector.load %arg1[%c0, %c0_0] : memref<8x32xf32, #tpu.memory_space<vmem>>, vector<8x32xf32>
    %c0_1 = arith.constant 0 : index
    %c0_2 = arith.constant 0 : index
    %1 = vector.load %arg2[%c0_1, %c0_2] : memref<8x32xf32, #tpu.memory_space<vmem>>, vector<8x32xf32>
    %2 = math.exp %1 : vector<8x32xf32>
    %3 = arith.mulf %0, %0 : vector<8x32xf32>
    %4 = arith.addf %2, %3 : vector<8x32xf32>
    %cst = arith.constant 1.000000e+00 : f32
    %5 = vector.broadcast %cst : f32 to vector<8x32xf32>
    %6 = arith.subf %4, %5 : vector<8x32xf32>
    %7 = arith.subf %6, %1 : vector<8x32xf32>
    %cst_3 = arith.constant dense<0.000000e+00> : vector<8xf32>
    %8 = vector.multi_reduction <add>, %7, %cst_3 [1] : vector<8x32xf32> to vector<8xf32>
    %9 = vector.shape_cast %8 : vector<8xf32> to vector<8x1xf32>
    %cst_4 = arith.constant 5.000000e-01 : f32
    %10 = vector.broadcast %cst_4 : f32 to vector<8x1xf32>
    %11 = arith.mulf %10, %9 : vector<8x1xf32>
    %c0_5 = arith.constant 0 : index
    %c0_6 = arith.constant 0 : index
    %12 = vector.load %arg3[%c0_5, %c0_6] : memref<8x1xf32, #tpu.memory_space<vmem>>, vector<8x1xf32>
    tpu.vector_store %arg3[%c0_5, %c0_6], %11 {strides = array<i32>} : memref<8x1xf32, #tpu.memory_space<vmem>>, vector<8x1xf32>,
    return
  }
  func.func @transform_0(%arg0: i32) -> (i32, i32) {
    %c0_i32 = arith.constant 0 : i32
    %c0_i32_0 = arith.constant 0 : i32
    return %arg0, %c0_i32 : i32, i32
  }
  func.func @transform_1(%arg0: i32) -> (i32, i32) {
    %c0_i32 = arith.constant 0 : i32
    %c0_i32_0 = arith.constant 0 : i32
    return %arg0, %c0_i32 : i32, i32
  }
  func.func @transform_2(%arg0: i32) -> (i32, i32) {
    %c0_i32 = arith.constant 0 : i32
    %c0_i32_0 = arith.constant 0 : i32
    return %arg0, %c0_i32 : i32, i32
  }
}

</mosaic_0001>

<llo_original>
// kernel: tpu_custom_call.1
$region0: #{tpu_custom_call.1}
  #allocation0 [shape = 'u32[]', space=smem, size = 0x4, offset = 0x4, fixed_abs, tag = 'smem constant byte address 0x4 - core index']
  #allocation1 [shape = 'u32[72,128]{1,0:T(1,128)}', space=vmem, size = 0x9000, scoped, tag = 'internal scratch']
  %s0 = inlined_call_operand.hbm [shape: f32[8,32], index: 0, kind: input, shape index: {}]
  %s1 = inlined_call_operand.hbm [shape: f32[8,32], index: 1, kind: input, shape index: {}]
  %s2 = inlined_call_operand.vmem [shape: f32[8,1], index: 2, kind: output, shape index: {}]
  %s3 = sld [smem:[#allocation0]]
  $region26: #{tpu_custom_call.1} parent=0
    _
  %s5 = ssub.s32 1, %s3
  %s6 = scalar_select 0, %s5, %s3
  $region1: #{tpu_custom_call.1} parent=0
    #allocation2 [shape = 'u8[4096]{0}', space=vmem, size = 0x1000, scoped, tag = 'input window, operand 0, single buffered']
    #allocation3 [shape = 's32[1]{0}', space=sflag, size = 0x4, scoped, tag = 'scoped memory for tpu_custom_call.1']
    #allocation4 [shape = 'u8[4096]{0}', space=vmem, size = 0x1000, scoped, tag = 'input window, operand 1, single buffered']
    #allocation5 [shape = 's32[1]{0}', space=sflag, size = 0x4, scoped, tag = 'scoped memory for tpu_custom_call.1']
    %7 = vsyncpa [#allocation3], 0
    %8 = vsyncpa [#allocation5], 0
    // Predicated region
    $region2: #{tpu_custom_call.1} parent=1 // pred_check
      _
    $region3: #{tpu_custom_call.1} parent=1 // pred_check_branch
      %10 = sbr.rel (0) target = $region5
    $region4: #{tpu_custom_call.1} parent=1 // pred_region
      %12 = vsyncadd [#allocation3], 0
      %s14 = sshll.u32 %s0, 4
      %s15 = int_to_ptr.hbm [resolvable:$true] %s14
      %s16 = sshll.u32 [#allocation2], 4
      %s17 = int_to_ptr.vmem [resolvable:$true] %s16
      %19 = dma.hbm_to_vmem [thread:$0]  %s15, 128, %s17, [#allocation3]
    $region5: #{tpu_custom_call.1} parent=1 // pred_fallthru
      _
    // Predicated region
    $region6: #{tpu_custom_call.1} parent=1 // pred_check
      _
    $region7: #{tpu_custom_call.1} parent=1 // pred_check_branch
      %21 = sbr.rel (0) target = $region9
    $region8: #{tpu_custom_call.1} parent=1 // pred_region
      %23 = vsyncadd [#allocation5], 0
      %s25 = sshll.u32 %s1, 4
      %s26 = int_to_ptr.hbm [resolvable:$true] %s25
      %s27 = sshll.u32 [#allocation4], 4
      %s28 = int_to_ptr.vmem [resolvable:$true] %s27
      %30 = dma.hbm_to_vmem [thread:$0]  %s26, 128, %s28, [#allocation5]
    $region9: #{tpu_custom_call.1} parent=1 // pred_fallthru
      _
    // Predicated region
    $region10: #{tpu_custom_call.1} parent=1 // pred_check
      _
    $region11: #{tpu_custom_call.1} parent=1 // pred_check_branch
      %32 = sbr.rel (0) target = $region13
    $region12: #{tpu_custom_call.1} parent=1 // pred_region
      %34 = dma.done [#allocation3], 128
    $region13: #{tpu_custom_call.1} parent=1 // pred_fallthru
      _
    // Predicated region
    $region14: #{tpu_custom_call.1} parent=1 // pred_check
      _
    $region15: #{tpu_custom_call.1} parent=1 // pred_check_branch
      %36 = sbr.rel (0) target = $region17
    $region16: #{tpu_custom_call.1} parent=1 // pred_region
      %38 = dma.done [#allocation5], 128
    $region17: #{tpu_custom_call.1} parent=1 // pred_fallthru
      _
    %v39 = vld [vmem:[#allocation2] sm:$0xff]
    %v40 = vld [vmem:[#allocation4] sm:$0xff]
    %v41 = vmul.f32 %v40, 1.442695
    %v42 = vpow.pop %v41
    %v43 = vmul.f32 %v39, %v39
    %v44 = vadd.f32 %v42, %v43
    %v45 = vsub.f32 %v44, 1.0
    %v46 = vsub.f32 %v45, %v40
    %vm47 = vcmask 261120
    %v48 = vsel %vm47, %v46, 0.0
    %49 = vadd.xlane.f32.xlu0 %v48
    %v50 = vpop.xlane.xlu0 %49
    %v51 = vmul.f32 %v50, 0.5
    %vm52 = vcmask 7168
    %53 = vst.msk [vmem:[%s2] sm:$0xff] %vm52, %v51
    // Predicated region
    $region18: #{tpu_custom_call.1} parent=1 // pred_check
      _
    $region19: #{tpu_custom_call.1} parent=1 // pred_check_branch
      %55 = sbr.rel (0) target = $region21
    $region20: #{tpu_custom_call.1} parent=1 // pred_region
      _
    $region21: #{tpu_custom_call.1} parent=1 // pred_fallthru
      _
    // Predicated region
    $region22: #{tpu_custom_call.1} parent=1 // pred_check
      _
    $region23: #{tpu_custom_call.1} parent=1 // pred_check_branch
      %57 = sbr.rel (0) target = $region25
    $region24: #{tpu_custom_call.1} parent=1 // pred_region
      _
    $region25: #{tpu_custom_call.1} parent=1 // pred_fallthru
      _
    %58 = vsyncpa [#allocation3], 1
    %59 = vsyncpa [#allocation5], 1

</llo_original>
